<compile_context>
chip_gen: v7x
topology: tpu7x:2x2x1
jax: 0.10.0
libtpu: 0.0.40
codegen_flags: <defaults>
</compile_context>

<pallas_src>
import functools
import math

import jax
import jax.numpy as jnp
from jax.experimental import pallas as pl
from jax.experimental.pallas import tpu as pltpu


# MXU operand dtype.  Accumulation is always f32 (preferred_element_type) and elementwise
# math is f32, so this only affects matmul-input rounding (~1e-3 relative).
MXU_DTYPE = jnp.bfloat16


# ---------------------------------------------------------------------------
# Pallas kernel: fused  sinusoidal basis -> linear1 -> SiLU -> linear2
# ---------------------------------------------------------------------------

def _time_embed_mlp_kernel(t_ref, w1_ref, b1_ref, w2_ref, b2_ref, o_ref, *,
                           d_embedding, freq_scale):
    D = d_embedding
    half = D // 2

    # ---- fused sinusoidal basis (in-register; exp/sin/cos on the EUP) ----
    t = t_ref[...]                                              # (tm, 1) f32 timesteps
    lane = jax.lax.broadcasted_iota(jnp.int32, (1, D), 1)       # 0 .. D-1 along lanes
    k = jnp.where(lane < half, lane, lane - half).astype(jnp.float32)  # 0..half-1, twice
    freq = jnp.exp(k * (-math.log(freq_scale) / half))          # (1, D) = scale**(-k/half)
    ang = t * freq                                              # (tm, D)
    # lanes [0, half)  -> sin(ang);  lanes [half, D) -> cos(ang)   == cat(sin, cos, -1)
    emb = jnp.where(lane < half, jnp.sin(ang), jnp.cos(ang))    # (tm, D) f32

    # ---- linear1 + SiLU: (tm, D) @ (D, 4D) + b1, bf16 operands / f32 accumulation ----
    h = jnp.dot(emb.astype(w1_ref.dtype), w1_ref[...],
                preferred_element_type=jnp.float32)
    h = h + b1_ref[...]                                         # bias broadcast in-kernel
    # SiLU with a single transcendental: sigmoid(x) == 0.5 * (1 + tanh(x/2))  (exact).
    h = h * (0.5 * jnp.tanh(0.5 * h) + 0.5)

    # ---- linear2: (tm, 4D) @ (4D, D) + b2 ----
    out = jnp.dot(h.astype(w2_ref.dtype), w2_ref[...],
                  preferred_element_type=jnp.float32)
    o_ref[...] = (out + b2_ref[...]).astype(o_ref.dtype)        # lane-dense / masked store


# ---------------------------------------------------------------------------
# Wrapper
# ---------------------------------------------------------------------------

def _round_up(x, m):
    return (x + m - 1) // m * m


def _pick_row_block(batch, block_rows):
    """Row-tile size: divisible by 8 (sublane) or equal to the full batch dim."""
    if batch > block_rows:
        return block_rows                                   # multiple of 8, >=2 grid steps
    if batch >= 64:
        # Split into ~2 sublane-aligned blocks so dimension_semantics=("parallel",)
        # can actually shard the grid across both TensorCores on v7x.
        return min(block_rows, _round_up(pl.cdiv(batch, 2), 8))
    return batch                                            # single block == full array dim


@functools.partial(jax.jit,
                   static_argnames=("d_embedding", "freq_scale", "block_rows", "out_dtype"))
def time_embedding_fwd(t, params, *, d_embedding, freq_scale=10000.0,
                       block_rows=512, out_dtype=jnp.float32):
    B = t.shape[0]
    D = d_embedding
    H = 4 * D
    assert block_rows % 8 == 0

    t2d = t.reshape(B, 1).astype(jnp.float32)               # metadata-only reshape

    tm = _pick_row_block(B, block_rows)
    grid = (pl.cdiv(B, tm),)                                 # ragged last block is fine:
                                                             # Pallas masks the writeback.

    w1, b1 = params["w1"], params["b1"]                      # (D, H) bf16, (1, H) f32
    w2, b2 = params["w2"], params["b2"]                      # (H, D) bf16, (1, D) f32

    kernel = functools.partial(_time_embed_mlp_kernel,
                               d_embedding=D, freq_scale=float(freq_scale))

    return pl.pallas_call(
        kernel,
        out_shape=jax.ShapeDtypeStruct((B, D), out_dtype),
        grid=grid,
        in_specs=[
            pl.BlockSpec((tm, 1), lambda i: (i, 0)),         # timesteps (row tile)
            pl.BlockSpec((D, H), lambda i: (0, 0)),          # w1 (resident across tiles)
            pl.BlockSpec((1, H), lambda i: (0, 0)),          # b1
            pl.BlockSpec((H, D), lambda i: (0, 0)),          # w2
            pl.BlockSpec((1, D), lambda i: (0, 0)),          # b2
        ],
        out_specs=pl.BlockSpec((tm, D), lambda i: (i, 0)),
        compiler_params=pltpu.CompilerParams(
            dimension_semantics=("parallel",),
            vmem_limit_bytes=32 * 1024 * 1024,
        ),
    )(t2d, w1, b1, w2, b2)


# ---------------------------------------------------------------------------
# Pure-JAX reference (for in-script correctness check) and parameter init
# ---------------------------------------------------------------------------

def time_embedding_ref(t, params, *, d_embedding, freq_scale=10000.0):
    half = d_embedding // 2
    k = jnp.arange(half, dtype=jnp.float32)
    freq = jnp.power(jnp.float32(freq_scale), -k / half)
    ang = t.reshape(-1, 1).astype(jnp.float32) * freq
    emb = jnp.concatenate([jnp.sin(ang), jnp.cos(ang)], axis=-1)
    w1 = params["w1"].astype(jnp.float32)
    w2 = params["w2"].astype(jnp.float32)
    h = emb @ w1 + params["b1"]
    h = h * jax.nn.sigmoid(h)
    return h @ w2 + params["b2"]


def init_params(key, d_embedding):
    """Shapes follow the PyTorch __init__; stored pre-transposed ((in, out)) and pre-cast
    to the MXU operand dtype so the forward does no per-call transpose/cast."""
    D, H = d_embedding, 4 * d_embedding
    k1, k2, k3, k4 = jax.random.split(key, 4)

    def uniform(k, shape, fan_in):
        bound = 1.0 / math.sqrt(fan_in)
        return jax.random.uniform(k, shape, jnp.float32, -bound, bound)

    return {
        "w1": uniform(k1, (D, H), D).astype(MXU_DTYPE),      # linear1.weight^T
        "b1": uniform(k2, (1, H), D),                        # linear1.bias
        "w2": uniform(k3, (H, D), H).astype(MXU_DTYPE),      # linear2.weight^T
        "b2": uniform(k4, (1, D), H),                        # linear2.bias
    }


if __name__ == "__main__":
    key = jax.random.PRNGKey(0)
    kt, kp = jax.random.split(key)

    D_EMB = 128
    params = init_params(kp, D_EMB)

    # Small batch (typical diffusion step): single-block, single grid step.
    B = 2
    t = jax.random.uniform(kt, (B,), jnp.float32, 0.0, 1000.0)
    out = jax.block_until_ready(time_embedding_fwd(t, params, d_embedding=D_EMB))
    assert out.shape == (B, D_EMB), out.shape
    assert bool(jnp.all(jnp.isfinite(out)))
    ref = time_embedding_ref(t, params, d_embedding=D_EMB)
    err = float(jnp.max(jnp.abs(out - ref)))
    assert err < 5e-2, f"max abs err {err}"

    # Larger ragged batch: exercises the >=2-step "parallel" grid (v7x megacore path)
    # and the masked boundary block now that the host-side pad/slice is gone.
    B2 = 65
    t2 = jax.random.uniform(jax.random.PRNGKey(1), (B2,), jnp.float32, 0.0, 1000.0)
    out2 = jax.block_until_ready(time_embedding_fwd(t2, params, d_embedding=D_EMB))
    assert out2.shape == (B2, D_EMB), out2.shape
    ref2 = time_embedding_ref(t2, params, d_embedding=D_EMB)
    err2 = float(jnp.max(jnp.abs(out2 - ref2)))
    assert err2 < 5e-2, f"max abs err {err2}"

    print("KERNEL_OK")
</pallas_src>

<mosaic_0001>
module attributes {stable_mosaic.version = 11 : i64} {
  func.func @_time_embed_mlp_kernel(%arg0: i32, %arg1: memref<2x1xf32, #tpu.memory_space<vmem>>, %arg2: memref<128x512xbf16, #tpu.memory_space<vmem>>, %arg3: memref<1x512xf32, #tpu.memory_space<vmem>>, %arg4: memref<512x128xbf16, #tpu.memory_space<vmem>>, %arg5: memref<1x128xf32, #tpu.memory_space<vmem>>, %arg6: memref<2x128xf32, #tpu.memory_space<vmem>>) attributes {dimension_semantics = [#tpu.dimension_semantics<parallel>], iteration_bounds = array<i64: 1>, scalar_prefetch = 0 : i64, scratch_operands = 0 : i64, tpu.core_type = #tpu.core_type<tc>, window_params = [{transform_indices = @transform_0, window_bounds = array<i64: 2, 1>}, {pipeline_mode = #tpu.pipeline_mode<synchronous>, transform_indices = @transform_1, window_bounds = array<i64: 128, 512>}, {pipeline_mode = #tpu.pipeline_mode<synchronous>, transform_indices = @transform_2, window_bounds = array<i64: 1, 512>}, {pipeline_mode = #tpu.pipeline_mode<synchronous>, transform_indices = @transform_3, window_bounds = array<i64: 512, 128>}, {pipeline_mode = #tpu.pipeline_mode<synchronous>, transform_indices = @transform_4, window_bounds = array<i64: 1, 128>}, {transform_indices = @transform_5, window_bounds = array<i64: 2, 128>}]} {
    %c0 = arith.constant 0 : index
    %c0_0 = arith.constant 0 : index
    %0 = vector.load %arg1[%c0, %c0_0] : memref<2x1xf32, #tpu.memory_space<vmem>>, vector<2x1xf32>
    %1 = tpu.iota {dimensions = array<i32: 1>} : vector<1x128xi32>
    %c64_i32 = arith.constant 64 : i32
    %2 = vector.broadcast %c64_i32 : i32 to vector<1x128xi32>
    %3 = arith.cmpi slt, %1, %2 : vector<1x128xi32>
    %c64_i32_1 = arith.constant 64 : i32
    %4 = vector.broadcast %c64_i32_1 : i32 to vector<1x128xi32>
    %5 = arith.subi %1, %4 : vector<1x128xi32>
    %6 = arith.select %3, %1, %5 : vector<1x128xi1>, vector<1x128xi32>
    %7 = arith.sitofp %6 : vector<1x128xi32> to vector<1x128xf32>
    %cst = arith.constant -0.14391157 : f32
    %8 = vector.broadcast %cst : f32 to vector<1x128xf32>
    %9 = arith.mulf %7, %8 : vector<1x128xf32>
    %10 = math.exp %9 : vector<1x128xf32>
    %11 = vector.broadcast %0 : vector<2x1xf32> to vector<2x128xf32>
    %12 = vector.broadcast %10 : vector<1x128xf32> to vector<2x128xf32>
    %13 = arith.mulf %11, %12 : vector<2x128xf32>
    %c64_i32_2 = arith.constant 64 : i32
    %14 = vector.broadcast %c64_i32_2 : i32 to vector<1x128xi32>
    %15 = arith.cmpi slt, %1, %14 : vector<1x128xi32>
    %16 = math.sin %13 : vector<2x128xf32>
    %17 = math.cos %13 : vector<2x128xf32>
    %18 = vector.shape_cast %15 : vector<1x128xi1> to vector<1x128xi1>
    %19 = vector.broadcast %18 : vector<1x128xi1> to vector<2x128xi1>
    %20 = arith.select %19, %16, %17 : vector<2x128xi1>, vector<2x128xf32>
    %21 = arith.truncf %20 : vector<2x128xf32> to vector<2x128xbf16>
    %c0_3 = arith.constant 0 : index
    %c0_4 = arith.constant 0 : index
    %22 = vector.load %arg2[%c0_3, %c0_4] : memref<128x512xbf16, #tpu.memory_space<vmem>>, vector<128x512xbf16>
    %cst_5 = arith.constant dense<0.000000e+00> : vector<2x512xf32>
    %23 = tpu.matmul %21, %22, %cst_5 {dimension_numbers = #tpu.dot_dimension_numbers<[1], [0], [0], [1], [0, 0, 1, 1], [], []>} : vector<2x128xbf16>, vector<128x512xbf16>, vector<2x512xf32> -> vector<2x512xf32>
    %c0_6 = arith.constant 0 : index
    %c0_7 = arith.constant 0 : index
    %24 = vector.load %arg3[%c0_6, %c0_7] : memref<1x512xf32, #tpu.memory_space<vmem>>, vector<1x512xf32>
    %25 = vector.broadcast %24 : vector<1x512xf32> to vector<2x512xf32>
    %26 = arith.addf %23, %25 : vector<2x512xf32>
    %cst_8 = arith.constant 5.000000e-01 : f32
    %27 = vector.broadcast %cst_8 : f32 to vector<2x512xf32>
    %28 = arith.mulf %27, %26 : vector<2x512xf32>
    %29 = math.tanh %28 : vector<2x512xf32>
    %cst_9 = arith.constant 5.000000e-01 : f32
    %30 = vector.broadcast %cst_9 : f32 to vector<2x512xf32>
    %31 = arith.mulf %30, %29 : vector<2x512xf32>
    %cst_10 = arith.constant 5.000000e-01 : f32
    %32 = vector.broadcast %cst_10 : f32 to vector<2x512xf32>
    %33 = arith.addf %31, %32 : vector<2x512xf32>
    %34 = arith.mulf %26, %33 : vector<2x512xf32>
    %35 = arith.truncf %34 : vector<2x512xf32> to vector<2x512xbf16>
    %c0_11 = arith.constant 0 : index
    %c0_12 = arith.constant 0 : index
    %36 = vector.load %arg4[%c0_11, %c0_12] : memref<512x128xbf16, #tpu.memory_space<vmem>>, vector<512x128xbf16>
    %cst_13 = arith.constant dense<0.000000e+00> : vector<2x128xf32>
    %37 = tpu.matmul %35, %36, %cst_13 {dimension_numbers = #tpu.dot_dimension_numbers<[1], [0], [0], [1], [0, 0, 1, 1], [], []>} : vector<2x512xbf16>, vector<512x128xbf16>, vector<2x128xf32> -> vector<2x128xf32>
    %c0_14 = arith.constant 0 : index
    %c0_15 = arith.constant 0 : index
    %38 = vector.load %arg5[%c0_14, %c0_15] : memref<1x128xf32, #tpu.memory_space<vmem>>, vector<1x128xf32>
    %39 = vector.broadcast %38 : vector<1x128xf32> to vector<2x128xf32>
    %40 = arith.addf %37, %39 : vector<2x128xf32>
    %c0_16 = arith.constant 0 : index
    %c0_17 = arith.constant 0 : index
    %41 = vector.load %arg6[%c0_16, %c0_17] : memref<2x128xf32, #tpu.memory_space<vmem>>, vector<2x128xf32>
    tpu.vector_store %arg6[%c0_16, %c0_17], %40 {strides = array<i32>} : memref<2x128xf32, #tpu.memory_space<vmem>>, vector<2x128xf32>,
    return
  }
  func.func @transform_0(%arg0: i32) -> (i32, i32) {
    %c0_i32 = arith.constant 0 : i32
    %c0_i32_0 = arith.constant 0 : i32
    return %arg0, %c0_i32 : i32, i32
  }
  func.func @transform_1(%arg0: i32) -> (i32, i32) {
    %c0_i32 = arith.constant 0 : i32
    %c0_i32_0 = arith.constant 0 : i32
    %c0_i32_1 = arith.constant 0 : i32
    return %c0_i32, %c0_i32_0 : i32, i32
  }
  func.func @transform_2(%arg0: i32) -> (i32, i32) {
    %c0_i32 = arith.constant 0 : i32
    %c0_i32_0 = arith.constant 0 : i32
    %c0_i32_1 = arith.constant 0 : i32
    return %c0_i32, %c0_i32_0 : i32, i32
  }
  func.func @transform_3(%arg0: i32) -> (i32, i32) {
    %c0_i32 = arith.constant 0 : i32
    %c0_i32_0 = arith.constant 0 : i32
    %c0_i32_1 = arith.constant 0 : i32
    return %c0_i32, %c0_i32_0 : i32, i32
  }
  func.func @transform_4(%arg0: i32) -> (i32, i32) {
    %c0_i32 = arith.constant 0 : i32
    %c0_i32_0 = arith.constant 0 : i32
    %c0_i32_1 = arith.constant 0 : i32
    return %c0_i32, %c0_i32_0 : i32, i32
  }
  func.func @transform_5(%arg0: i32) -> (i32, i32) {
    %c0_i32 = arith.constant 0 : i32
    %c0_i32_0 = arith.constant 0 : i32
    return %arg0, %c0_i32 : i32, i32
  }
}

</mosaic_0001>

<llo_original>
// kernel: time_embedding_fwd.1
$region0: #{time_embedding_fwd.1}
  #allocation0 [shape = 'u32[]', space=smem, size = 0x4, offset = 0x4, fixed_abs, tag = 'smem constant byte address 0x4 - core index']
  #allocation1 [shape = 'u32[144,128]{1,0:T(1,128)}', space=vmem, size = 0x12000, scoped, tag = 'internal scratch']
  %s0 = inlined_call_operand.vmem [shape: f32[2,1], index: 0, kind: input, shape index: {}]
  %s1 = inlined_call_operand.hbm [shape: bf16[128,512], index: 1, kind: input, shape index: {}]
  %s2 = inlined_call_operand.vmem [shape: f32[1,512], index: 2, kind: input, shape index: {}]
  %s3 = inlined_call_operand.hbm [shape: bf16[512,128], index: 3, kind: input, shape index: {}]
  %s4 = inlined_call_operand.vmem [shape: f32[1,128], index: 4, kind: input, shape index: {}]
  %s5 = inlined_call_operand.hbm [shape: f32[2,128], index: 5, kind: output, shape index: {}]
  %s6 = sld [smem:[#allocation0]]
  $region38: #{time_embedding_fwd.1} parent=0
    _
  %s8 = ssub.s32 1, %s6
  %s9 = scalar_select 0, %s8, %s6
  $region1: #{time_embedding_fwd.1} parent=0
    #allocation2 [shape = 'u8[131072]{0}', space=vmem, size = 0x20000, scoped, tag = 'input window, operand 1, single buffered']
    #allocation3 [shape = 's32[1]{0}', space=sflag, size = 0x4, scoped, tag = 'scoped memory for time_embedding_fwd.1']
    #allocation4 [shape = 's32[1]{0}', space=sflag, size = 0x4, scoped, tag = 'scoped memory for time_embedding_fwd.1']
    #allocation5 [shape = 'u8[131072]{0}', space=vmem, size = 0x20000, scoped, tag = 'input window, operand 3, single buffered']
    #allocation6 [shape = 's32[1]{0}', space=sflag, size = 0x4, scoped, tag = 'scoped memory for time_embedding_fwd.1']
    #allocation7 [shape = 'u8[1024]{0}', space=vmem, size = 0x400, scoped, tag = 'output window, operand 0, single buffered']
    %10 = vsyncpa [#allocation3], 0
    %11 = vsyncpa [#allocation6], 0
    %12 = vsyncpa [#allocation4], 0
    // Predicated region
    $region2: #{time_embedding_fwd.1} parent=1 // pred_check
      _
    $region3: #{time_embedding_fwd.1} parent=1 // pred_check_branch
      %14 = sbr.rel (0) target = $region5
    $region4: #{time_embedding_fwd.1} parent=1 // pred_region
      _
    $region5: #{time_embedding_fwd.1} parent=1 // pred_fallthru
      _
    // Predicated region
    $region6: #{time_embedding_fwd.1} parent=1 // pred_check
      _
    $region7: #{time_embedding_fwd.1} parent=1 // pred_check_branch
      %16 = sbr.rel (0) target = $region9
    $region8: #{time_embedding_fwd.1} parent=1 // pred_region
      %s18 = ssub.s32 4096, 4096
      %19 = vsyncadd [#allocation3], %s18
      %s20 = sshll.u32 [#allocation2], 4
      %s21 = int_to_ptr.vmem [resolvable:$true] %s20
      %26 = dma.hbm_to_vmem [thread:$0]  %s1, 4096, %s21, [#allocation3], 256, 256, 16
    $region9: #{time_embedding_fwd.1} parent=1 // pred_fallthru
      _
    // Predicated region
    $region10: #{time_embedding_fwd.1} parent=1 // pred_check
      _
    $region11: #{time_embedding_fwd.1} parent=1 // pred_check_branch
      %28 = sbr.rel (0) target = $region13
    $region12: #{time_embedding_fwd.1} parent=1 // pred_region
      _
    $region13: #{time_embedding_fwd.1} parent=1 // pred_fallthru
      _
    // Predicated region
    $region14: #{time_embedding_fwd.1} parent=1 // pred_check
      _
    $region15: #{time_embedding_fwd.1} parent=1 // pred_check_branch
      %30 = sbr.rel (0) target = $region17
    $region16: #{time_embedding_fwd.1} parent=1 // pred_region
      %s32 = ssub.s32 4096, 4096
      %33 = vsyncadd [#allocation6], %s32
      %s34 = sshll.u32 [#allocation5], 4
      %s35 = int_to_ptr.vmem [resolvable:$true] %s34
      %40 = dma.hbm_to_vmem [thread:$0]  %s3, 4096, %s35, [#allocation6], 64, 64, 4
    $region17: #{time_embedding_fwd.1} parent=1 // pred_fallthru
      _
    // Predicated region
    $region18: #{time_embedding_fwd.1} parent=1 // pred_check
      _
    $region19: #{time_embedding_fwd.1} parent=1 // pred_check_branch
      %42 = sbr.rel (0) target = $region21
    $region20: #{time_embedding_fwd.1} parent=1 // pred_region
      _
    $region21: #{time_embedding_fwd.1} parent=1 // pred_fallthru
      _
    // Predicated region
    $region22: #{time_embedding_fwd.1} parent=1 // pred_check
      _
    $region23: #{time_embedding_fwd.1} parent=1 // pred_check_branch
      %44 = sbr.rel (0) target = $region25
    $region24: #{time_embedding_fwd.1} parent=1 // pred_region
      %45 = dma.done [#allocation3], 4096
    $region25: #{time_embedding_fwd.1} parent=1 // pred_fallthru
      _
    // Predicated region
    $region26: #{time_embedding_fwd.1} parent=1 // pred_check
      _
    $region27: #{time_embedding_fwd.1} parent=1 // pred_check_branch
      %47 = sbr.rel (0) target = $region29
    $region28: #{time_embedding_fwd.1} parent=1 // pred_region
      %48 = dma.done [#allocation6], 4096
    $region29: #{time_embedding_fwd.1} parent=1 // pred_fallthru
      _
    %v50 = vld [vmem:[%s0] sm:$0x3]
    %v51 = vlaneseq
    %v52 = vand.u32 %v51, 127
    %vm53 = vcmp.lt.s32.totalorder %v52, 64
    %v54 = vsub.s32 %v52, 64
    %v55 = vsel %vm53, %v52, %v54
    %v56 = vcvt.s32.f32 %v55
    %v57 = vmul.f32 %v56, -0.14391157
    %v58 = vmul.f32 %v57, 1.442695
    %v59 = vpow.pop %v58
    %61 = vset.pattern.permute.xlu0 0
    %62 = vperm.xlu0 %61, %v50
    %v63 = vpop.permute.xlu0 %62
    %v65 = vmul.f32 %v63, %v59
    %v66 = vand.u32 2147483647, %v65
    %vm67 = vcmp.le.f32.partialorder %v66, 0.7853982
    %vm68 = vcmp.lt.s32.totalorder %v65, 0
    %v69 = vand.u32 %v65, 2139095040
    %v70 = vshrl.u32 %v69, 23
    %v71 = vsub.s32 %v70, 127
    %v72 = vand.u32 2147483647, %v65
    %v73 = vand.u32 %v72, 8388607
    %v74 = vor.u32 %v73, 8388608
    %v75 = vsub.s32 0, %v74
    %v76 = vadd.s32 %v71, 1
    %vm77 = vcmp.gt.s32.totalorder %v76, 0
    %v78 = vsel %vm77, %v76, 0
    %v79 = vshrl.u32 %v78, 5
    %v80 = vand.u32 %v78, 31
    %v81 = vsub.s32 32, %v80
    %v82 = vshrl.u32 683565275, %v81
    %v83 = vshll.u32 683565275, %v80
    %v84 = vshrl.u32 2475754826, %v81
    %v85 = vor.u32 %v83, %v84
    %v86 = vshll.u32 2475754826, %v80
    %v87 = vshrl.u32 2131351028, %v81
    %v88 = vor.u32 %v86, %v87
    %v89 = vshll.u32 2131351028, %v80
    %v90 = vshrl.u32 2102212464, %v81
    %v91 = vor.u32 %v89, %v90
    %v92 = vshll.u32 2102212464, %v80
    %v93 = vshrl.u32 920167782, %v81
    %v94 = vor.u32 %v92, %v93
    %v95 = vshll.u32 920167782, %v80
    %v96 = vshrl.u32 1326507024, %v81
    %v97 = vor.u32 %v95, %v96
    %vm98 = vcmp.lt.s32.totalorder %v79, 1
    %vm99 = vcmp.lt.s32.totalorder %v79, 2
    %vm100 = vcmp.lt.s32.totalorder %v79, 3
    %vm101 = vcmp.lt.s32.totalorder %v79, 4
    %v102 = vsel %vm98, %v82, %v85
    %v103 = vsel %vm101, %v91, 2102212464
    %v104 = vsel %vm100, %v88, %v103
    %v105 = vsel %vm99, %v102, %v104
    %v106 = vsel %vm98, %v85, %v88
    %v107 = vsel %vm101, %v94, 920167782
    %v108 = vsel %vm100, %v91, %v107
    %v109 = vsel %vm99, %v106, %v108
    %v110 = vsel %vm98, %v88, %v91
    %v111 = vsel %vm101, %v97, 1326507024
    %v112 = vsel %vm100, %v94, %v111
    %v113 = vsel %vm99, %v110, %v112
    %v114 = vshll.u32 %v74, 8
    %v115 = vmul.u32.u64.compose %v114, %v113
    %v116 = vextract.low.u32 %v115
    %v117 = vextract.high.u32 %v115
    %v118 = vmul.u32.u64.compose %v114, %v109
    %v119 = vextract.low.u32 %v118
    %v120 = vextract.high.u32 %v118
    %v121 = vmul.u32 %v114, %v105
    %v122 = vadd.s32 %v117, %v119
    %vm123 = vc.u32 %v117, %v119
    %v124 = vadd.s32 %v120, 1
    %v125 = vsel %vm123, %v124, %v120
    %v126 = vadd.s32 %v121, %v125
    %v127 = vadd.s32 %v126, 536870912
    %v128 = vshrl.u32 %v127, 30
    %v129 = vshll.u32 %v128, 30
    %v130 = vsub.s32 %v126, %v129
    %vm131 = vcmp.lt.s32.totalorder %v130, 0
    %v132 = vsub.s32 0, %v130
    %v133 = vsel %vm131, %v132, %v130
    %v134 = vclz %v133
    %v135 = vsub.s32 %v134, 2
    %vm136 = vcmp.gt.s32.totalorder 0, %v135
    %v137 = vsel %vm136, 0, %v135
    %v138 = vsub.s32 32, %v137
    %v139 = vshll.u32 %v130, %v137
    %v140 = vshrl.u32 %v122, %v138
    %v141 = vor.u32 %v139, %v140
    %v142 = vsub.s32 4294967266, %v137
    %v143 = vadd.s32 %v142, 127
    %v144 = vshll.u32 %v143, 23
    %v145 = vor.u32 4788187, %v144
    %v146 = vand.u32 2147483647, %v145
    %v148 = vcvt.s32.f32 %v141
    %v149 = vmul.f32 %v148, %v146
    %v150 = vxor.u32 %v149, 2147483648
    %v151 = vsel %vm68, %v150, %v149
    %v152 = vsub.s32 4, %v128
    %v153 = vsel %vm68, %v152, %v128
    %v154 = vsel %vm67, %v65, %v151
    %v155 = vsel %vm67, 0, %v153
    %v156 = vcosq.f32.pop %v154
    %v157 = vsinq.f32.pop %v154
    %vm158 = vweird.f32 %v65
    %v159 = vadd.s32 %v155, 3
    %v160 = vand.u32 %v159, 3
    %vm161 = vcmp.lt.s32.totalorder %v160, 2
    %vm162 = vcmp.eq.s32.totalorder %v160, 0
    %v163 = vxor.u32 %v157, 2147483648
    %v164 = vsel %vm162, %v156, %v163
    %vm165 = vcmp.eq.s32.totalorder %v160, 2
    %v166 = vxor.u32 %v156, 2147483648
    %v167 = vsel %vm165, %v166, %v157
    %v168 = vsel %vm161, %v164, %v167
    %v169 = vsel %vm158, nan, %v168
    %v170 = vand.u32 2147483647, %v65
    %vm171 = vcmp.le.f32.partialorder %v170, 0.7853982
    %vm172 = vcmp.lt.s32.totalorder %v65, 0
    %v173 = vand.u32 %v65, 2139095040
    %v174 = vshrl.u32 %v173, 23
    %v175 = vsub.s32 %v174, 127
    %v176 = vand.u32 2147483647, %v65
    %v177 = vand.u32 %v176, 8388607
    %v178 = vor.u32 %v177, 8388608
    %v179 = vsub.s32 0, %v178
    %v180 = vadd.s32 %v175, 1
    %vm181 = vcmp.gt.s32.totalorder %v180, 0
    %v182 = vsel %vm181, %v180, 0
    %v183 = vshrl.u32 %v182, 5
    %v184 = vand.u32 %v182, 31
    %v185 = vsub.s32 32, %v184
    %v186 = vshrl.u32 683565275, %v185
    %v187 = vshll.u32 683565275, %v184
    %v188 = vshrl.u32 2475754826, %v185
    %v189 = vor.u32 %v187, %v188
    %v190 = vshll.u32 2475754826, %v184
    %v191 = vshrl.u32 2131351028, %v185
    %v192 = vor.u32 %v190, %v191
    %v193 = vshll.u32 2131351028, %v184
    %v194 = vshrl.u32 2102212464, %v185
    %v195 = vor.u32 %v193, %v194
    %v196 = vshll.u32 2102212464, %v184
    %v197 = vshrl.u32 920167782, %v185
    %v198 = vor.u32 %v196, %v197
    %v199 = vshll.u32 920167782, %v184
    %v200 = vshrl.u32 1326507024, %v185
    %v201 = vor.u32 %v199, %v200
    %vm202 = vcmp.lt.s32.totalorder %v183, 1
    %vm203 = vcmp.lt.s32.totalorder %v183, 2
    %vm204 = vcmp.lt.s32.totalorder %v183, 3
    %vm205 = vcmp.lt.s32.totalorder %v183, 4
    %v206 = vsel %vm202, %v186, %v189
    %v207 = vsel %vm205, %v195, 2102212464
    %v208 = vsel %vm204, %v192, %v207
    %v209 = vsel %vm203, %v206, %v208
    %v210 = vsel %vm202, %v189, %v192
    %v211 = vsel %vm205, %v198, 920167782
    %v212 = vsel %vm204, %v195, %v211
    %v213 = vsel %vm203, %v210, %v212
    %v214 = vsel %vm202, %v192, %v195
    %v215 = vsel %vm205, %v201, 1326507024
    %v216 = vsel %vm204, %v198, %v215
    %v217 = vsel %vm203, %v214, %v216
    %v218 = vshll.u32 %v178, 8
    %v219 = vmul.u32.u64.compose %v218, %v217
    %v220 = vextract.low.u32 %v219
    %v221 = vextract.high.u32 %v219
    %v222 = vmul.u32.u64.compose %v218, %v213
    %v223 = vextract.low.u32 %v222
    %v224 = vextract.high.u32 %v222
    %v225 = vmul.u32 %v218, %v209
    %v226 = vadd.s32 %v221, %v223
    %vm227 = vc.u32 %v221, %v223
    %v228 = vadd.s32 %v224, 1
    %v229 = vsel %vm227, %v228, %v224
    %v230 = vadd.s32 %v225, %v229
    %v231 = vadd.s32 %v230, 536870912
    %v232 = vshrl.u32 %v231, 30
    %v233 = vshll.u32 %v232, 30
    %v234 = vsub.s32 %v230, %v233
    %vm235 = vcmp.lt.s32.totalorder %v234, 0
    %v236 = vsub.s32 0, %v234
    %v237 = vsel %vm235, %v236, %v234
    %v238 = vclz %v237
    %v239 = vsub.s32 %v238, 2
    %vm240 = vcmp.gt.s32.totalorder 0, %v239
    %v241 = vsel %vm240, 0, %v239
    %v242 = vsub.s32 32, %v241
    %v243 = vshll.u32 %v234, %v241
    %v244 = vshrl.u32 %v226, %v242
    %v245 = vor.u32 %v243, %v244
    %v246 = vsub.s32 4294967266, %v241
    %v247 = vadd.s32 %v246, 127
    %v248 = vshll.u32 %v247, 23
    %v249 = vor.u32 4788187, %v248
    %v250 = vand.u32 2147483647, %v249
    %v252 = vcvt.s32.f32 %v245
    %v253 = vmul.f32 %v252, %v250
    %v254 = vxor.u32 %v253, 2147483648
    %v255 = vsel %vm172, %v254, %v253
    %v256 = vsub.s32 4, %v232
    %v257 = vsel %vm172, %v256, %v232
    %v258 = vsel %vm171, %v65, %v255
    %v259 = vsel %vm171, 0, %v257
    %v260 = vcosq.f32.pop %v258
    %v261 = vsinq.f32.pop %v258
    %vm262 = vweird.f32 %v65
    %v263 = vand.u32 %v259, 3
    %vm264 = vcmp.lt.s32.totalorder %v263, 2
    %vm265 = vcmp.eq.s32.totalorder %v263, 0
    %v266 = vxor.u32 %v261, 2147483648
    %v267 = vsel %vm265, %v260, %v266
    %vm268 = vcmp.eq.s32.totalorder %v263, 2
    %v269 = vxor.u32 %v260, 2147483648
    %v270 = vsel %vm268, %v269, %v261
    %v271 = vsel %vm264, %v267, %v270
    %v272 = vsel %vm262, nan, %v271
    %v273 = vsel %vm53, 1, 0
    %vm274 = vcmp.eq.s32.totalorder %v273, 1
    %v275 = vsel %vm274, %v169, %v272
    %v276 = vpack.c.bf16 %v275, %v275
    %v277 = vld [vmem:[#allocation2] sm:$0xff]
    %v278 = vld [vmem:[#allocation2 + $0x8] sm:$0xff]
    %v279 = vld [vmem:[#allocation2 + $0x10] sm:$0xff]
    %v280 = vld [vmem:[#allocation2 + $0x18] sm:$0xff]
    %v281 = vld [vmem:[#allocation2 + $0x20] sm:$0xff]
    %v282 = vld [vmem:[#allocation2 + $0x28] sm:$0xff]
    %v283 = vld [vmem:[#allocation2 + $0x30] sm:$0xff]
    %v284 = vld [vmem:[#allocation2 + $0x38] sm:$0xff]
    %v285 = vld [vmem:[#allocation2 + $0x40] sm:$0xff]
    %v286 = vld [vmem:[#allocation2 + $0x48] sm:$0xff]
    %v287 = vld [vmem:[#allocation2 + $0x50] sm:$0xff]
    %v288 = vld [vmem:[#allocation2 + $0x58] sm:$0xff]
    %v289 = vld [vmem:[#allocation2 + $0x60] sm:$0xff]
    %v290 = vld [vmem:[#allocation2 + $0x68] sm:$0xff]
    %v291 = vld [vmem:[#allocation2 + $0x70] sm:$0xff]
    %v292 = vld [vmem:[#allocation2 + $0x78] sm:$0xff]
    %v293 = vld [vmem:[#allocation2 + $0x80] sm:$0xff]
    %v294 = vld [vmem:[#allocation2 + $0x88] sm:$0xff]
    %v295 = vld [vmem:[#allocation2 + $0x90] sm:$0xff]
    %v296 = vld [vmem:[#allocation2 + $0x98] sm:$0xff]
    %v297 = vld [vmem:[#allocation2 + $0xa0] sm:$0xff]
    %v298 = vld [vmem:[#allocation2 + $0xa8] sm:$0xff]
    %v299 = vld [vmem:[#allocation2 + $0xb0] sm:$0xff]
    %v300 = vld [vmem:[#allocation2 + $0xb8] sm:$0xff]
    %v301 = vld [vmem:[#allocation2 + $0xc0] sm:$0xff]
    %v302 = vld [vmem:[#allocation2 + $0xc8] sm:$0xff]
    %v303 = vld [vmem:[#allocation2 + $0xd0] sm:$0xff]
    %v304 = vld [vmem:[#allocation2 + $0xd8] sm:$0xff]
    %v305 = vld [vmem:[#allocation2 + $0xe0] sm:$0xff]
    %v306 = vld [vmem:[#allocation2 + $0xe8] sm:$0xff]
    %v307 = vld [vmem:[#allocation2 + $0xf0] sm:$0xff]
    %v308 = vld [vmem:[#allocation2 + $0xf8] sm:$0xff]
    %v309 = vld [vmem:[%s2] sm:$0xf]
    %v311 = vlaneseq
    %v312 = vshrl.u32 %v311, 7
    %v313 = vsub.s32 0, %v312
    %v314 = vrot.slane %v309, %v313
    %v315 = vlaneseq
    %v316 = vshrl.u32 %v315, 7
    %v317 = vsub.s32 1, %v316
    %v318 = vrot.slane %v309, %v317
    %v319 = vlaneseq
    %v320 = vshrl.u32 %v319, 7
    %v321 = vsub.s32 2, %v320
    %v322 = vrot.slane %v309, %v321
    %v323 = vlaneseq
    %v324 = vshrl.u32 %v323, 7
    %v325 = vsub.s32 3, %v324
    %v326 = vrot.slane %v309, %v325
    %v363 = vunpack.c.l.b16 %v277
    %v364 = vunpack.c.h.b16 %v277
    %v365 = vunpack.c.l.b16 %v278
    %v366 = vunpack.c.h.b16 %v278
    %v367 = vunpack.c.l.b16 %v279
    %v368 = vunpack.c.h.b16 %v279
    %v369 = vunpack.c.l.b16 %v280
    %v370 = vunpack.c.h.b16 %v280
    %v371 = vunpack.c.l.b16 %v281
    %v372 = vunpack.c.h.b16 %v281
    %v373 = vunpack.c.l.b16 %v282
    %v374 = vunpack.c.h.b16 %v282
    %v375 = vunpack.c.l.b16 %v283
    %v376 = vunpack.c.h.b16 %v283
    %v377 = vunpack.c.l.b16 %v284
    %v378 = vunpack.c.h.b16 %v284
    %v379 = vunpack.c.l.b16 %v285
    %v380 = vunpack.c.h.b16 %v285
    %v381 = vunpack.c.l.b16 %v286
    %v382 = vunpack.c.h.b16 %v286
    %v383 = vunpack.c.l.b16 %v287
    %v384 = vunpack.c.h.b16 %v287
    %v385 = vunpack.c.l.b16 %v288
    %v386 = vunpack.c.h.b16 %v288
    %v387 = vunpack.c.l.b16 %v289
    %v388 = vunpack.c.h.b16 %v289
    %v389 = vunpack.c.l.b16 %v290
    %v390 = vunpack.c.h.b16 %v290
    %v391 = vunpack.c.l.b16 %v291
    %v392 = vunpack.c.h.b16 %v291
    %v393 = vunpack.c.l.b16 %v292
    %v394 = vunpack.c.h.b16 %v292
    %v395 = vunpack.c.l.b16 %v293
    %v396 = vunpack.c.h.b16 %v293
    %v397 = vunpack.c.l.b16 %v294
    %v398 = vunpack.c.h.b16 %v294
    %v399 = vunpack.c.l.b16 %v295
    %v400 = vunpack.c.h.b16 %v295
    %v401 = vunpack.c.l.b16 %v296
    %v402 = vunpack.c.h.b16 %v296
    %v403 = vunpack.c.l.b16 %v297
    %v404 = vunpack.c.h.b16 %v297
    %v405 = vunpack.c.l.b16 %v298
    %v406 = vunpack.c.h.b16 %v298
    %v407 = vunpack.c.l.b16 %v299
    %v408 = vunpack.c.h.b16 %v299
    %v409 = vunpack.c.l.b16 %v300
    %v410 = vunpack.c.h.b16 %v300
    %v411 = vunpack.c.l.b16 %v301
    %v412 = vunpack.c.h.b16 %v301
    %v413 = vunpack.c.l.b16 %v302
    %v414 = vunpack.c.h.b16 %v302
    %v415 = vunpack.c.l.b16 %v303
    %v416 = vunpack.c.h.b16 %v303
    %v417 = vunpack.c.l.b16 %v304
    %v418 = vunpack.c.h.b16 %v304
    %v419 = vunpack.c.l.b16 %v305
    %v420 = vunpack.c.h.b16 %v305
    %v421 = vunpack.c.l.b16 %v306
    %v422 = vunpack.c.h.b16 %v306
    %v423 = vunpack.c.l.b16 %v307
    %v424 = vunpack.c.h.b16 %v307
    %v425 = vunpack.c.l.b16 %v308
    %v426 = vunpack.c.h.b16 %v308
    %v427 = vpack.c.b16 %v367, %v363
    %v428 = vpack.c.b16 %v368, %v364
    %v429 = vpack.c.b16 %v369, %v365
    %v430 = vpack.c.b16 %v370, %v366
    %v431 = vpack.c.b16 %v375, %v371
    %v432 = vpack.c.b16 %v376, %v372
    %v433 = vpack.c.b16 %v377, %v373
    %v434 = vpack.c.b16 %v378, %v374
    %v435 = vpack.c.b16 %v383, %v379
    %v436 = vpack.c.b16 %v384, %v380
    %v437 = vpack.c.b16 %v385, %v381
    %v438 = vpack.c.b16 %v386, %v382
    %v439 = vpack.c.b16 %v391, %v387
    %v440 = vpack.c.b16 %v392, %v388
    %v441 = vpack.c.b16 %v393, %v389
    %v442 = vpack.c.b16 %v394, %v390
    %v443 = vpack.c.b16 %v399, %v395
    %v444 = vpack.c.b16 %v400, %v396
    %v445 = vpack.c.b16 %v401, %v397
    %v446 = vpack.c.b16 %v402, %v398
    %v447 = vpack.c.b16 %v407, %v403
    %v448 = vpack.c.b16 %v408, %v404
    %v449 = vpack.c.b16 %v409, %v405
    %v450 = vpack.c.b16 %v410, %v406
    %v451 = vpack.c.b16 %v415, %v411
    %v452 = vpack.c.b16 %v416, %v412
    %v453 = vpack.c.b16 %v417, %v413
    %v454 = vpack.c.b16 %v418, %v414
    %v455 = vpack.c.b16 %v423, %v419
    %v456 = vpack.c.b16 %v424, %v420
    %v457 = vpack.c.b16 %v425, %v421
    %v458 = vpack.c.b16 %v426, %v422
    %491 = vmatprep.subr.bf16.mxu0 %v428
    %492 = vmatpush1.bf16.msra.mxu0 %v427
    %493 = vmatprep.subr.bf16.mxu0 %v432
    %494 = vmatpush1.bf16.msra.mxu0 %v431
    %495 = vmatprep.subr.bf16.mxu0 %v436
    %496 = vmatpush1.bf16.msra.mxu0 %v435
    %497 = vmatprep.subr.bf16.mxu0 %v440
    %498 = vmatpush1.bf16.msra.mxu0 %v439
    %499 = vmatprep.subr.bf16.mxu0 %v444
    %500 = vmatpush1.bf16.msra.mxu0 %v443
    %501 = vmatprep.subr.bf16.mxu0 %v448
    %502 = vmatpush1.bf16.msra.mxu0 %v447
    %503 = vmatprep.subr.bf16.mxu0 %v452
    %504 = vmatpush1.bf16.msra.mxu0 %v451
    %505 = vmatprep.subr.bf16.mxu0 %v456
    %506 = vmatpush1.bf16.msra.mxu0 %v455
    %507 = vmatprep.subr.bf16.mxu0 0
    %508 = vmatpush1.bf16.msra.mxu0 0
    %509 = vmatprep.subr.bf16.mxu0 0
    %510 = vmatpush1.bf16.msra.mxu0 0
    %511 = vmatprep.subr.bf16.mxu0 0
    %512 = vmatpush1.bf16.msra.mxu0 0
    %513 = vmatprep.subr.bf16.mxu0 0
    %514 = vmatpush1.bf16.msra.mxu0 0
    %515 = vmatprep.subr.bf16.mxu0 0
    %516 = vmatpush1.bf16.msra.mxu0 0
    %517 = vmatprep.subr.bf16.mxu0 0
    %518 = vmatpush1.bf16.msra.mxu0 0
    %519 = vmatprep.subr.bf16.mxu0 0
    %520 = vmatpush1.bf16.msra.mxu0 0
    %521 = vmatprep.subr.bf16.mxu0 0
    %522 = vmatpush1.bf16.msra.mxu0 0
    %523 = vmatprep.mubr.bf16.mxu0 0
    %524 = vmatmul.mubr.bf16.gmra.mrb[0].mxu0 %v276
    %v525 = vpop.f32.mrb[0].mxu0
    %v526 = vadd.f32 %v314, %v525
    %v527 = vpop.f32.mrb[0].mxu0
    %v528 = vadd.f32 %v318, %v527
    %v529 = vpop.f32.mrb[0].mxu0
    %v530 = vpop.f32.mrb[0].mxu0
    %531 = vdwg.mxu0
    %532 = vmatprep.subr.bf16.mxu0 %v430
    %533 = vmatpush1.bf16.msra.mxu0 %v429
    %534 = vmatprep.subr.bf16.mxu0 %v434
    %535 = vmatpush1.bf16.msra.mxu0 %v433
    %536 = vmatprep.subr.bf16.mxu0 %v438
    %537 = vmatpush1.bf16.msra.mxu0 %v437
    %538 = vmatprep.subr.bf16.mxu0 %v442
    %539 = vmatpush1.bf16.msra.mxu0 %v441
    %540 = vmatprep.subr.bf16.mxu0 %v446
    %541 = vmatpush1.bf16.msra.mxu0 %v445
    %542 = vmatprep.subr.bf16.mxu0 %v450
    %543 = vmatpush1.bf16.msra.mxu0 %v449
    %544 = vmatprep.subr.bf16.mxu0 %v454
    %545 = vmatpush1.bf16.msra.mxu0 %v453
    %546 = vmatprep.subr.bf16.mxu0 %v458
    %547 = vmatpush1.bf16.msra.mxu0 %v457
    %548 = vmatprep.subr.bf16.mxu0 0
    %549 = vmatpush1.bf16.msra.mxu0 0
    %550 = vmatprep.subr.bf16.mxu0 0
    %551 = vmatpush1.bf16.msra.mxu0 0
    %552 = vmatprep.subr.bf16.mxu0 0
    %553 = vmatpush1.bf16.msra.mxu0 0
    %554 = vmatprep.subr.bf16.mxu0 0
    %555 = vmatpush1.bf16.msra.mxu0 0
    %556 = vmatprep.subr.bf16.mxu0 0
    %557 = vmatpush1.bf16.msra.mxu0 0
    %558 = vmatprep.subr.bf16.mxu0 0
    %559 = vmatpush1.bf16.msra.mxu0 0
    %560 = vmatprep.subr.bf16.mxu0 0
    %561 = vmatpush1.bf16.msra.mxu0 0
    %562 = vmatprep.subr.bf16.mxu0 0
    %563 = vmatpush1.bf16.msra.mxu0 0
    %564 = vmatprep.mubr.bf16.mxu0 0
    %565 = vmatmul.mubr.bf16.gmra.mrb[0].mxu0 %v276
    %v566 = vpop.f32.mrb[0].mxu0
    %v567 = vadd.f32 %v322, %v566
    %v568 = vpop.f32.mrb[0].mxu0
    %v569 = vadd.f32 %v326, %v568
    %v570 = vpop.f32.mrb[0].mxu0
    %v571 = vpop.f32.mrb[0].mxu0
    %572 = vdwg.mxu0
    %v573 = vmul.f32 %v526, 0.5
    %v574 = vmul.f32 %v528, 0.5
    %v575 = vmul.f32 %v567, 0.5
    %v576 = vmul.f32 %v569, 0.5
    %v577 = vtanh.pop %v573
    %v578 = vtanh.pop %v574
    %v579 = vtanh.pop %v575
    %v580 = vtanh.pop %v576
    %v581 = vmul.f32 %v577, 0.5
    %v582 = vmul.f32 %v578, 0.5
    %v583 = vmul.f32 %v579, 0.5
    %v584 = vmul.f32 %v580, 0.5
    %v585 = vadd.f32 %v581, 0.5
    %v586 = vadd.f32 %v582, 0.5
    %v587 = vadd.f32 %v583, 0.5
    %v588 = vadd.f32 %v584, 0.5
    %v589 = vmul.f32 %v526, %v585
    %v590 = vmul.f32 %v528, %v586
    %v591 = vmul.f32 %v567, %v587
    %v592 = vmul.f32 %v569, %v588
    %v593 = vpack.c.bf16 %v589, %v589
    %v594 = vpack.c.bf16 %v590, %v590
    %v595 = vpack.c.bf16 %v591, %v591
    %v596 = vpack.c.bf16 %v592, %v592
    %v597 = vld [vmem:[#allocation5] sm:$0xf]
    %v598 = vld [vmem:[#allocation5 + $0x4] sm:$0xf]
    %v599 = vld [vmem:[#allocation5 + $0x8] sm:$0xf]
    %v600 = vld [vmem:[#allocation5 + $0xc] sm:$0xf]
    %v601 = vld [vmem:[#allocation5 + $0x10] sm:$0xf]
    %v602 = vld [vmem:[#allocation5 + $0x14] sm:$0xf]
    %v603 = vld [vmem:[#allocation5 + $0x18] sm:$0xf]
    %v604 = vld [vmem:[#allocation5 + $0x1c] sm:$0xf]
    %v605 = vld [vmem:[#allocation5 + $0x20] sm:$0xf]
    %v606 = vld [vmem:[#allocation5 + $0x24] sm:$0xf]
    %v607 = vld [vmem:[#allocation5 + $0x28] sm:$0xf]
    %v608 = vld [vmem:[#allocation5 + $0x2c] sm:$0xf]
    %v609 = vld [vmem:[#allocation5 + $0x30] sm:$0xf]
    %v610 = vld [vmem:[#allocation5 + $0x34] sm:$0xf]
    %v611 = vld [vmem:[#allocation5 + $0x38] sm:$0xf]
    %v612 = vld [vmem:[#allocation5 + $0x3c] sm:$0xf]
    %v613 = vld [vmem:[#allocation5 + $0x40] sm:$0xf]
    %v614 = vld [vmem:[#allocation5 + $0x44] sm:$0xf]
    %v615 = vld [vmem:[#allocation5 + $0x48] sm:$0xf]
    %v616 = vld [vmem:[#allocation5 + $0x4c] sm:$0xf]
    %v617 = vld [vmem:[#allocation5 + $0x50] sm:$0xf]
    %v618 = vld [vmem:[#allocation5 + $0x54] sm:$0xf]
    %v619 = vld [vmem:[#allocation5 + $0x58] sm:$0xf]
    %v620 = vld [vmem:[#allocation5 + $0x5c] sm:$0xf]
    %v621 = vld [vmem:[#allocation5 + $0x60] sm:$0xf]
    %v622 = vld [vmem:[#allocation5 + $0x64] sm:$0xf]
    %v623 = vld [vmem:[#allocation5 + $0x68] sm:$0xf]
    %v624 = vld [vmem:[#allocation5 + $0x6c] sm:$0xf]
    %v625 = vld [vmem:[#allocation5 + $0x70] sm:$0xf]
    %v626 = vld [vmem:[#allocation5 + $0x74] sm:$0xf]
    %v627 = vld [vmem:[#allocation5 + $0x78] sm:$0xf]
    %v628 = vld [vmem:[#allocation5 + $0x7c] sm:$0xf]
    %v629 = vld [vmem:[#allocation5 + $0x80] sm:$0xf]
    %v630 = vld [vmem:[#allocation5 + $0x84] sm:$0xf]
    %v631 = vld [vmem:[#allocation5 + $0x88] sm:$0xf]
    %v632 = vld [vmem:[#allocation5 + $0x8c] sm:$0xf]
    %v633 = vld [vmem:[#allocation5 + $0x90] sm:$0xf]
    %v634 = vld [vmem:[#allocation5 + $0x94] sm:$0xf]
    %v635 = vld [vmem:[#allocation5 + $0x98] sm:$0xf]
    %v636 = vld [vmem:[#allocation5 + $0x9c] sm:$0xf]
    %v637 = vld [vmem:[#allocation5 + $0xa0] sm:$0xf]
    %v638 = vld [vmem:[#allocation5 + $0xa4] sm:$0xf]
    %v639 = vld [vmem:[#allocation5 + $0xa8] sm:$0xf]
    %v640 = vld [vmem:[#allocation5 + $0xac] sm:$0xf]
    %v641 = vld [vmem:[#allocation5 + $0xb0] sm:$0xf]
    %v642 = vld [vmem:[#allocation5 + $0xb4] sm:$0xf]
    %v643 = vld [vmem:[#allocation5 + $0xb8] sm:$0xf]
    %v644 = vld [vmem:[#allocation5 + $0xbc] sm:$0xf]
    %v645 = vld [vmem:[#allocation5 + $0xc0] sm:$0xf]
    %v646 = vld [vmem:[#allocation5 + $0xc4] sm:$0xf]
    %v647 = vld [vmem:[#allocation5 + $0xc8] sm:$0xf]
    %v648 = vld [vmem:[#allocation5 + $0xcc] sm:$0xf]
    %v649 = vld [vmem:[#allocation5 + $0xd0] sm:$0xf]
    %v650 = vld [vmem:[#allocation5 + $0xd4] sm:$0xf]
    %v651 = vld [vmem:[#allocation5 + $0xd8] sm:$0xf]
    %v652 = vld [vmem:[#allocation5 + $0xdc] sm:$0xf]
    %v653 = vld [vmem:[#allocation5 + $0xe0] sm:$0xf]
    %v654 = vld [vmem:[#allocation5 + $0xe4] sm:$0xf]
    %v655 = vld [vmem:[#allocation5 + $0xe8] sm:$0xf]
    %v656 = vld [vmem:[#allocation5 + $0xec] sm:$0xf]
    %v657 = vld [vmem:[#allocation5 + $0xf0] sm:$0xf]
    %v658 = vld [vmem:[#allocation5 + $0xf4] sm:$0xf]
    %v659 = vld [vmem:[#allocation5 + $0xf8] sm:$0xf]
    %v660 = vld [vmem:[#allocation5 + $0xfc] sm:$0xf]
    %v661 = vld [vmem:[%s4] sm:$0x1]
    %v663 = vlaneseq
    %v664 = vshrl.u32 %v663, 7
    %v665 = vsub.s32 0, %v664
    %v666 = vrot.slane %v661, %v665
    %v732 = vunpack.c.l.b16 %v597
    %v733 = vunpack.c.l.b16 %v598
    %v734 = vunpack.c.l.b16 %v599
    %v735 = vunpack.c.l.b16 %v600
    %v736 = vunpack.c.l.b16 %v601
    %v737 = vunpack.c.l.b16 %v602
    %v738 = vunpack.c.l.b16 %v603
    %v739 = vunpack.c.l.b16 %v604
    %v740 = vunpack.c.l.b16 %v605
    %v741 = vunpack.c.l.b16 %v606
    %v742 = vunpack.c.l.b16 %v607
    %v743 = vunpack.c.l.b16 %v608
    %v744 = vunpack.c.l.b16 %v609
    %v745 = vunpack.c.l.b16 %v610
    %v746 = vunpack.c.l.b16 %v611
    %v747 = vunpack.c.l.b16 %v612
    %v748 = vunpack.c.l.b16 %v613
    %v749 = vunpack.c.l.b16 %v614
    %v750 = vunpack.c.l.b16 %v615
    %v751 = vunpack.c.l.b16 %v616
    %v752 = vunpack.c.l.b16 %v617
    %v753 = vunpack.c.l.b16 %v618
    %v754 = vunpack.c.l.b16 %v619
    %v755 = vunpack.c.l.b16 %v620
    %v756 = vunpack.c.l.b16 %v621
    %v757 = vunpack.c.l.b16 %v622
    %v758 = vunpack.c.l.b16 %v623
    %v759 = vunpack.c.l.b16 %v624
    %v760 = vunpack.c.l.b16 %v625
    %v761 = vunpack.c.l.b16 %v626
    %v762 = vunpack.c.l.b16 %v627
    %v763 = vunpack.c.l.b16 %v628
    %v764 = vunpack.c.l.b16 %v629
    %v765 = vunpack.c.l.b16 %v630
    %v766 = vunpack.c.l.b16 %v631
    %v767 = vunpack.c.l.b16 %v632
    %v768 = vunpack.c.l.b16 %v633
    %v769 = vunpack.c.l.b16 %v634
    %v770 = vunpack.c.l.b16 %v635
    %v771 = vunpack.c.l.b16 %v636
    %v772 = vunpack.c.l.b16 %v637
    %v773 = vunpack.c.l.b16 %v638
    %v774 = vunpack.c.l.b16 %v639
    %v775 = vunpack.c.l.b16 %v640
    %v776 = vunpack.c.l.b16 %v641
    %v777 = vunpack.c.l.b16 %v642
    %v778 = vunpack.c.l.b16 %v643
    %v779 = vunpack.c.l.b16 %v644
    %v780 = vunpack.c.l.b16 %v645
    %v781 = vunpack.c.l.b16 %v646
    %v782 = vunpack.c.l.b16 %v647
    %v783 = vunpack.c.l.b16 %v648
    %v784 = vunpack.c.l.b16 %v649
    %v785 = vunpack.c.l.b16 %v650
    %v786 = vunpack.c.l.b16 %v651
    %v787 = vunpack.c.l.b16 %v652
    %v788 = vunpack.c.l.b16 %v653
    %v789 = vunpack.c.l.b16 %v654
    %v790 = vunpack.c.l.b16 %v655
    %v791 = vunpack.c.l.b16 %v656
    %v792 = vunpack.c.l.b16 %v657
    %v793 = vunpack.c.l.b16 %v658
    %v794 = vunpack.c.l.b16 %v659
    %v795 = vunpack.c.l.b16 %v660
    %v796 = vpack.c.b16 %v733, %v732
    %v797 = vpack.c.b16 %v735, %v734
    %v798 = vpack.c.b16 %v737, %v736
    %v799 = vpack.c.b16 %v739, %v738
    %v800 = vpack.c.b16 %v741, %v740
    %v801 = vpack.c.b16 %v743, %v742
    %v802 = vpack.c.b16 %v745, %v744
    %v803 = vpack.c.b16 %v747, %v746
    %v804 = vpack.c.b16 %v749, %v748
    %v805 = vpack.c.b16 %v751, %v750
    %v806 = vpack.c.b16 %v753, %v752
    %v807 = vpack.c.b16 %v755, %v754
    %v808 = vpack.c.b16 %v757, %v756
    %v809 = vpack.c.b16 %v759, %v758
    %v810 = vpack.c.b16 %v761, %v760
    %v811 = vpack.c.b16 %v763, %v762
    %v812 = vpack.c.b16 %v765, %v764
    %v813 = vpack.c.b16 %v767, %v766
    %v814 = vpack.c.b16 %v769, %v768
    %v815 = vpack.c.b16 %v771, %v770
    %v816 = vpack.c.b16 %v773, %v772
    %v817 = vpack.c.b16 %v775, %v774
    %v818 = vpack.c.b16 %v777, %v776
    %v819 = vpack.c.b16 %v779, %v778
    %v820 = vpack.c.b16 %v781, %v780
    %v821 = vpack.c.b16 %v783, %v782
    %v822 = vpack.c.b16 %v785, %v784
    %v823 = vpack.c.b16 %v787, %v786
    %v824 = vpack.c.b16 %v789, %v788
    %v825 = vpack.c.b16 %v791, %v790
    %v826 = vpack.c.b16 %v793, %v792
    %v827 = vpack.c.b16 %v795, %v794
    %860 = vmatprep.subr.bf16.mxu0 0
    %861 = vmatpush1.bf16.msra.mxu0 %v796
    %862 = vmatprep.subr.bf16.mxu0 0
    %863 = vmatpush1.bf16.msra.mxu0 %v797
    %864 = vmatprep.subr.bf16.mxu0 0
    %865 = vmatpush1.bf16.msra.mxu0 %v798
    %866 = vmatprep.subr.bf16.mxu0 0
    %867 = vmatpush1.bf16.msra.mxu0 %v799
    %868 = vmatprep.subr.bf16.mxu0 0
    %869 = vmatpush1.bf16.msra.mxu0 %v800
    %870 = vmatprep.subr.bf16.mxu0 0
    %871 = vmatpush1.bf16.msra.mxu0 %v801
    %872 = vmatprep.subr.bf16.mxu0 0
    %873 = vmatpush1.bf16.msra.mxu0 %v802
    %874 = vmatprep.subr.bf16.mxu0 0
    %875 = vmatpush1.bf16.msra.mxu0 %v803
    %876 = vmatprep.subr.bf16.mxu0 0
    %877 = vmatpush1.bf16.msra.mxu0 %v804
    %878 = vmatprep.subr.bf16.mxu0 0
    %879 = vmatpush1.bf16.msra.mxu0 %v805
    %880 = vmatprep.subr.bf16.mxu0 0
    %881 = vmatpush1.bf16.msra.mxu0 %v806
    %882 = vmatprep.subr.bf16.mxu0 0
    %883 = vmatpush1.bf16.msra.mxu0 %v807
    %884 = vmatprep.subr.bf16.mxu0 0
    %885 = vmatpush1.bf16.msra.mxu0 %v808
    %886 = vmatprep.subr.bf16.mxu0 0
    %887 = vmatpush1.bf16.msra.mxu0 %v809
    %888 = vmatprep.subr.bf16.mxu0 0
    %889 = vmatpush1.bf16.msra.mxu0 %v810
    %890 = vmatprep.subr.bf16.mxu0 0
    %891 = vmatpush1.bf16.msra.mxu0 %v811
    %892 = vmatprep.mubr.bf16.mxu0 %v594
    %893 = vmatmul.mubr.bf16.gmra.mrb[0].mxu0 %v593
    %v894 = vpop.f32.mrb[0].mxu0
    %v895 = vadd.f32 %v666, %v894
    %v896 = vpop.f32.mrb[0].mxu0
    %v897 = vpop.f32.mrb[0].mxu0
    %v898 = vpop.f32.mrb[0].mxu0
    %899 = vdwg.mxu0
    %900 = vmatprep.subr.bf16.mxu0 0
    %901 = vmatpush1.bf16.msra.mxu0 %v812
    %902 = vmatprep.subr.bf16.mxu0 0
    %903 = vmatpush1.bf16.msra.mxu0 %v813
    %904 = vmatprep.subr.bf16.mxu0 0
    %905 = vmatpush1.bf16.msra.mxu0 %v814
    %906 = vmatprep.subr.bf16.mxu0 0
    %907 = vmatpush1.bf16.msra.mxu0 %v815
    %908 = vmatprep.subr.bf16.mxu0 0
    %909 = vmatpush1.bf16.msra.mxu0 %v816
    %910 = vmatprep.subr.bf16.mxu0 0
    %911 = vmatpush1.bf16.msra.mxu0 %v817
    %912 = vmatprep.subr.bf16.mxu0 0
    %913 = vmatpush1.bf16.msra.mxu0 %v818
    %914 = vmatprep.subr.bf16.mxu0 0
    %915 = vmatpush1.bf16.msra.mxu0 %v819
    %916 = vmatprep.subr.bf16.mxu0 0
    %917 = vmatpush1.bf16.msra.mxu0 %v820
    %918 = vmatprep.subr.bf16.mxu0 0
    %919 = vmatpush1.bf16.msra.mxu0 %v821
    %920 = vmatprep.subr.bf16.mxu0 0
    %921 = vmatpush1.bf16.msra.mxu0 %v822
    %922 = vmatprep.subr.bf16.mxu0 0
    %923 = vmatpush1.bf16.msra.mxu0 %v823
    %924 = vmatprep.subr.bf16.mxu0 0
    %925 = vmatpush1.bf16.msra.mxu0 %v824
    %926 = vmatprep.subr.bf16.mxu0 0
    %927 = vmatpush1.bf16.msra.mxu0 %v825
    %928 = vmatprep.subr.bf16.mxu0 0
    %929 = vmatpush1.bf16.msra.mxu0 %v826
    %930 = vmatprep.subr.bf16.mxu0 0
    %931 = vmatpush1.bf16.msra.mxu0 %v827
    %932 = vmatprep.mubr.bf16.mxu0 %v596
    %933 = vmatmul.mubr.bf16.gmra.mrb[0].mxu0 %v595
    %v934 = vpop.f32.mrb[0].mxu0
    %v935 = vadd.f32 %v895, %v934
    %v936 = vpop.f32.mrb[0].mxu0
    %v937 = vpop.f32.mrb[0].mxu0
    %v938 = vpop.f32.mrb[0].mxu0
    %939 = vdwg.mxu0
    %940 = vst [vmem:[#allocation7] sm:$0x3] %v935
    // Predicated region
    $region30: #{time_embedding_fwd.1} parent=1 // pred_check
      _
    $region31: #{time_embedding_fwd.1} parent=1 // pred_check_branch
      %942 = sbr.rel (0) target = $region33
    $region32: #{time_embedding_fwd.1} parent=1 // pred_region
      %s944 = ssub.s32 32, 32
      %945 = vsyncadd [#allocation4], %s944
      %s947 = sshll.u32 [#allocation7], 4
      %s948 = int_to_ptr.vmem [resolvable:$true] %s947
      %950 = dma.vmem_to_hbm [thread:$0]  %s948, 32, %s5, [#allocation4]
    $region33: #{time_embedding_fwd.1} parent=1 // pred_fallthru
      _
    // Predicated region
    $region34: #{time_embedding_fwd.1} parent=1 // pred_check
      _
    $region35: #{time_embedding_fwd.1} parent=1 // pred_check_branch
      %952 = sbr.rel (0) target = $region37
    $region36: #{time_embedding_fwd.1} parent=1 // pred_region
      %953 = dma.done [#allocation4], 32
    $region37: #{time_embedding_fwd.1} parent=1 // pred_fallthru
      _
    %954 = vsyncpa [#allocation3], 1
    %955 = vsyncpa [#allocation6], 1
    %956 = vsyncpa [#allocation4], 1

</llo_original>
